<compile_context>
chip_gen: v6e
topology: v6e:2x2x1
jax: 0.10.0
libtpu: 0.0.40
codegen_flags: <defaults>
</compile_context>

<pallas_src>
import jax
import jax.numpy as jnp
from jax import lax
from jax.experimental import pallas as pl
from jax.experimental.pallas import tpu as pltpu


def _round_up(x, m):
    return (x + m - 1) // m * m


def gru_chunk_kernel(x_ref, w_ih_ref, w_hh_ref, brz_ref, bhn_ref, y_ref,
                     gi_ref, h_ref):
    """Processes one time-chunk of a GRU layer.

    x_ref:   (t_tile*Bp, E)   bf16   chunk of inputs (time-major, rows = t*Bp + b)
    w_ih_ref:(E, 3*Hp)        bf16   pre-transposed, gate slabs padded to Hp lanes
    w_hh_ref:(Hp, 3*Hp)       bf16
    brz_ref: (1, 3*Hp)        f32    [b_ir+b_hr | b_iz+b_hz | b_in]  (folded biases)
    bhn_ref: (1, Hp)          f32    b_hn
    y_ref:   (t_tile*Bp, Hp)  bf16   per-timestep hidden outputs
    gi_ref:  (t_tile*Bp, 3*Hp) f32   scratch: hoisted input projection
    h_ref:   (Bp, Hp)         f32    scratch: hidden state carried across chunks
    """
    rows = x_ref.shape[0]
    bp, hp = h_ref.shape
    t_tile = rows // bp

    # Zero initial hidden state on the first chunk only (PyTorch default h0 = 0).
    @pl.when(pl.program_id(0) == 0)
    def _():
        h_ref[...] = jnp.zeros_like(h_ref)

    # Hoisted input projection for the whole chunk: one large matmul, with all
    # time-invariant biases folded in.  Only gh below depends on the recurrence.
    gi_ref[...] = jnp.dot(x_ref[...], w_ih_ref[...],
                          preferred_element_type=jnp.float32) + brz_ref[...]

    w_hh = w_hh_ref[...]
    bhn = jnp.broadcast_to(bhn_ref[...], (bp, hp))   # hoisted out of the time loop

    def step(t, h):
        row0 = pl.multiple_of(t * bp, bp)            # 8-sublane-aligned chunk row
        gi = gi_ref[pl.ds(row0, bp), :]              # (Bp, 3Hp) f32
        gh = jnp.dot(h.astype(w_hh.dtype), w_hh,
                     preferred_element_type=jnp.float32)   # (Bp, 3Hp) f32
        # PyTorch GRU gate order: [r, z, n]; gate slabs are Hp-lane aligned.
        r = jax.nn.sigmoid(gi[:, :hp] + gh[:, :hp])
        z = jax.nn.sigmoid(gi[:, hp:2 * hp] + gh[:, hp:2 * hp])
        n = jnp.tanh(gi[:, 2 * hp:] + r * (gh[:, 2 * hp:] + bhn))
        h_new = (1.0 - z) * n + z * h
        y_ref[pl.ds(row0, bp), :] = h_new.astype(y_ref.dtype)
        return h_new

    h_ref[...] = lax.fori_loop(0, t_tile, step, h_ref[...],
                               unroll=min(4, t_tile))


def gru_layer(x2d, w_ih_t, w_hh_t, brz, bhn, *, T_pad, Bp, Hp, t_tile):
    """x2d: (T_pad*Bp, E) bf16 time-major rows. Returns y2d: (T_pad*Bp, Hp) bf16."""
    E = x2d.shape[1]
    n_chunks = T_pad // t_tile
    rows = T_pad * Bp
    return pl.pallas_call(
        gru_chunk_kernel,
        out_shape=jax.ShapeDtypeStruct((rows, Hp), jnp.bfloat16),
        grid_spec=pltpu.PrefetchScalarGridSpec(
            num_scalar_prefetch=0,
            grid=(n_chunks,),
            in_specs=[
                pl.BlockSpec((t_tile * Bp, E), lambda c: (c, 0)),
                pl.BlockSpec((E, 3 * Hp), lambda c: (0, 0)),
                pl.BlockSpec((Hp, 3 * Hp), lambda c: (0, 0)),
                pl.BlockSpec((1, 3 * Hp), lambda c: (0, 0)),
                pl.BlockSpec((1, Hp), lambda c: (0, 0)),
            ],
            out_specs=pl.BlockSpec((t_tile * Bp, Hp), lambda c: (c, 0)),
            scratch_shapes=[
                pltpu.VMEM((t_tile * Bp, 3 * Hp), jnp.float32),  # hoisted gi
                pltpu.VMEM((Bp, Hp), jnp.float32),               # carried h
            ],
        ),
        compiler_params=pltpu.CompilerParams(
            dimension_semantics=("arbitrary",),          # time is sequential (h carry)
            vmem_limit_bytes=32 * 1024 * 1024,           # raise v5e's 16 MiB default
        ),
    )(x2d, w_ih_t, w_hh_t, brz, bhn)


def _choose_t_tile(T, Bp, E, Hp, budget_bytes=6 * 1024 * 1024):
    """Pick a time-chunk so double-buffered x/y blocks + gi scratch stay well under
    the scoped VMEM limit on every generation (incl. v7x's 64 MiB physical)."""
    per_t = Bp * (2 * 2 * E        # x chunk, bf16, double-buffered
                  + 2 * 2 * Hp     # y chunk, bf16, double-buffered
                  + 4 * 3 * Hp)    # gi scratch, f32
    t = max(1, budget_bytes // per_t)
    return int(min(T, t, 256))


def _prep_layer(layer, in_dim, in_dim_padded, H, Hp):
    """Pre-transpose weights, pad each gate slab to Hp lanes (zeros in the padding so
    padded lanes of h stay exactly zero), and fold time-invariant biases."""
    w_ih, w_hh = layer["w_ih"], layer["w_hh"]        # (3H, in_dim), (3H, H)
    b_ih, b_hh = layer["b_ih"], layer["b_hh"]        # (3H,), (3H,)

    w_ih_t = jnp.zeros((in_dim_padded, 3 * Hp), jnp.float32)
    w_hh_t = jnp.zeros((Hp, 3 * Hp), jnp.float32)
    brz = jnp.zeros((1, 3 * Hp), jnp.float32)
    bhn = jnp.zeros((1, Hp), jnp.float32)
    for g in range(3):                               # gates: r, z, n
        w_ih_t = w_ih_t.at[:in_dim, g * Hp:g * Hp + H].set(
            w_ih[g * H:(g + 1) * H, :].T)
        w_hh_t = w_hh_t.at[:H, g * Hp:g * Hp + H].set(
            w_hh[g * H:(g + 1) * H, :].T)
        bg = b_ih[g * H:(g + 1) * H]
        if g < 2:                                    # fold b_hr / b_hz into gi
            bg = bg + b_hh[g * H:(g + 1) * H]
        brz = brz.at[0, g * Hp:g * Hp + H].set(bg)
    bhn = bhn.at[0, :H].set(b_hh[2 * H:])            # b_hn stays inside r * (...)
    return (w_ih_t.astype(jnp.bfloat16), w_hh_t.astype(jnp.bfloat16), brz, bhn)


def init_params(key, num_embeddings, embedding_dim, hidden_size, num_layers):
    """Deterministic init mimicking nn.Embedding N(0,1) + nn.GRU U(-k, k)."""
    keys = jax.random.split(key, 1 + 4 * num_layers)
    embedding = jax.random.normal(keys[0], (num_embeddings, embedding_dim),
                                  dtype=jnp.float32)
    k = 1.0 / jnp.sqrt(hidden_size)
    layers = []
    for l in range(num_layers):
        in_dim = embedding_dim if l == 0 else hidden_size
        kw = keys[1 + 4 * l: 1 + 4 * (l + 1)]
        layers.append(dict(
            w_ih=jax.random.uniform(kw[0], (3 * hidden_size, in_dim),
                                    minval=-k, maxval=k, dtype=jnp.float32),
            w_hh=jax.random.uniform(kw[1], (3 * hidden_size, hidden_size),
                                    minval=-k, maxval=k, dtype=jnp.float32),
            b_ih=jax.random.uniform(kw[2], (3 * hidden_size,),
                                    minval=-k, maxval=k, dtype=jnp.float32),
            b_hh=jax.random.uniform(kw[3], (3 * hidden_size,),
                                    minval=-k, maxval=k, dtype=jnp.float32),
        ))
    return dict(embedding=embedding, gru=layers)


def simple_lstm_forward(params, inp, *, t_tile=None):
    """inp: (B, T) int32 token ids.  Returns (output (B,T,H), h_n (L,B,H)),
    matching PyTorch's `self.gru(self.embedding(inp))` with zero initial hidden."""
    B, T = inp.shape
    E = params["embedding"].shape[1]
    H = params["gru"][0]["w_hh"].shape[1]

    Bp = _round_up(B, 8)        # sublane-aligned batch
    Hp = _round_up(H, 128)      # lane-aligned gate / hidden width

    # Embedding gather directly time-major (frozen-table lookup stays in JAX).
    emb_tm = jnp.take(params["embedding"], inp.T, axis=0)      # (T, B, E)

    if t_tile is None:
        t_tile = _choose_t_tile(T, Bp, max(E, Hp), Hp)
    t_tile = max(1, min(t_tile, T))
    T_pad = _round_up(T, t_tile)

    x = jnp.zeros((T_pad, Bp, E), jnp.float32)
    x = x.at[:T, :B, :].set(emb_tm)
    x2d = x.reshape(T_pad * Bp, E).astype(jnp.bfloat16)        # contiguous: free reshape

    h_finals = []
    in_dim, in_dim_p = E, E
    y_tm = None
    for layer in params["gru"]:
        w_ih_t, w_hh_t, brz, bhn = _prep_layer(layer, in_dim, in_dim_p, H, Hp)
        y2d = gru_layer(x2d, w_ih_t, w_hh_t, brz, bhn,
                        T_pad=T_pad, Bp=Bp, Hp=Hp, t_tile=t_tile)
        y_tm = y2d.reshape(T_pad, Bp, Hp)
        h_finals.append(y_tm[T - 1, :B, :H].astype(jnp.float32))  # h_n == y[T-1]
        # TODO(synk): fuse consecutive layers in one kernel to skip this HBM round trip.
        x2d = y2d                                   # next layer input, already lane-dense bf16
        in_dim, in_dim_p = H, Hp

    out = y_tm[:T, :B, :H].astype(jnp.float32)      # (T, B, H)
    output = jnp.transpose(out, (1, 0, 2))          # batch_first (B, T, H)
    h_n = jnp.stack(h_finals, axis=0)               # (num_layers, B, H)
    return output, h_n


if __name__ == "__main__":
    num_embeddings = 50
    embedding_dim = 16
    hidden_size = 32
    num_layers = 2
    batch = 2
    seq = 8

    key = jax.random.PRNGKey(0)
    pkey, ikey = jax.random.split(key)
    params = init_params(pkey, num_embeddings, embedding_dim, hidden_size, num_layers)
    inp = jax.random.randint(ikey, (batch, seq), 0, num_embeddings, dtype=jnp.int32)

    # t_tile=4 -> 2 time chunks, exercising the cross-chunk hidden-state carry.
    output, h_n = simple_lstm_forward(params, inp, t_tile=4)
    jax.block_until_ready((output, h_n))

    assert output.shape == (batch, seq, hidden_size)
    assert h_n.shape == (num_layers, batch, hidden_size)
    assert bool(jnp.all(jnp.isfinite(output))) and bool(jnp.all(jnp.isfinite(h_n)))
    print("KERNEL_OK")
</pallas_src>

<mosaic_0001>
module attributes {stable_mosaic.version = 11 : i64} {
  func.func @gru_chunk_kernel(%arg0: i32, %arg1: memref<32x16xbf16, #tpu.memory_space<vmem>>, %arg2: memref<16x384xbf16, #tpu.memory_space<vmem>>, %arg3: memref<128x384xbf16, #tpu.memory_space<vmem>>, %arg4: memref<1x384xf32, #tpu.memory_space<vmem>>, %arg5: memref<1x128xf32, #tpu.memory_space<vmem>>, %arg6: memref<32x128xbf16, #tpu.memory_space<vmem>>, %arg7: memref<32x384xf32, #tpu.memory_space<vmem>>, %arg8: memref<8x128xf32, #tpu.memory_space<vmem>>) attributes {dimension_semantics = [#tpu.dimension_semantics<arbitrary>], iteration_bounds = array<i64: 2>, scalar_prefetch = 0 : i64, scratch_operands = 2 : i64, tpu.core_type = #tpu.core_type<tc>, window_params = [{transform_indices = @transform_0, window_bounds = array<i64: 32, 16>}, {pipeline_mode = #tpu.pipeline_mode<synchronous>, transform_indices = @transform_1, window_bounds = array<i64: 16, 384>}, {pipeline_mode = #tpu.pipeline_mode<synchronous>, transform_indices = @transform_2, window_bounds = array<i64: 128, 384>}, {pipeline_mode = #tpu.pipeline_mode<synchronous>, transform_indices = @transform_3, window_bounds = array<i64: 1, 384>}, {pipeline_mode = #tpu.pipeline_mode<synchronous>, transform_indices = @transform_4, window_bounds = array<i64: 1, 128>}, {transform_indices = @transform_5, window_bounds = array<i64: 32, 128>}]} {
    %c0_i32 = arith.constant 0 : i32
    %0 = arith.cmpi eq, %arg0, %c0_i32 : i32
    %1 = arith.extui %0 : i1 to i32
    %c0_i32_0 = arith.constant 0 : i32
    %2 = arith.cmpi ne, %1, %c0_i32_0 : i32
    scf.if %2 {
      %cst_44 = arith.constant 0.000000e+00 : f32
      %160 = vector.broadcast %cst_44 : f32 to vector<8x128xf32>
      %c0_45 = arith.constant 0 : index
      %c0_46 = arith.constant 0 : index
      %161 = vector.load %arg8[%c0_45, %c0_46] : memref<8x128xf32, #tpu.memory_space<vmem>>, vector<8x128xf32>
      tpu.vector_store %arg8[%c0_45, %c0_46], %160 {strides = array<i32>} : memref<8x128xf32, #tpu.memory_space<vmem>>, vector<8x128xf32>,
    } else {
    }
    %c0 = arith.constant 0 : index
    %c0_1 = arith.constant 0 : index
    %3 = vector.load %arg1[%c0, %c0_1] : memref<32x16xbf16, #tpu.memory_space<vmem>>, vector<32x16xbf16>
    %c0_2 = arith.constant 0 : index
    %c0_3 = arith.constant 0 : index
    %4 = vector.load %arg2[%c0_2, %c0_3] : memref<16x384xbf16, #tpu.memory_space<vmem>>, vector<16x384xbf16>
    %cst = arith.constant dense<0.000000e+00> : vector<32x384xf32>
    %5 = tpu.matmul %3, %4, %cst {dimension_numbers = #tpu.dot_dimension_numbers<[1], [0], [0], [1], [0, 0, 1, 1], [], []>} : vector<32x16xbf16>, vector<16x384xbf16>, vector<32x384xf32> -> vector<32x384xf32>
    %c0_4 = arith.constant 0 : index
    %c0_5 = arith.constant 0 : index
    %6 = vector.load %arg4[%c0_4, %c0_5] : memref<1x384xf32, #tpu.memory_space<vmem>>, vector<1x384xf32>
    %7 = vector.broadcast %6 : vector<1x384xf32> to vector<32x384xf32>
    %8 = arith.addf %5, %7 : vector<32x384xf32>
    %c0_6 = arith.constant 0 : index
    %c0_7 = arith.constant 0 : index
    %9 = vector.load %arg7[%c0_6, %c0_7] : memref<32x384xf32, #tpu.memory_space<vmem>>, vector<32x384xf32>
    tpu.vector_store %arg7[%c0_6, %c0_7], %8 {strides = array<i32>} : memref<32x384xf32, #tpu.memory_space<vmem>>, vector<32x384xf32>,
    %c0_8 = arith.constant 0 : index
    %c0_9 = arith.constant 0 : index
    %10 = vector.load %arg3[%c0_8, %c0_9] : memref<128x384xbf16, #tpu.memory_space<vmem>>, vector<128x384xbf16>
    %c0_10 = arith.constant 0 : index
    %c0_11 = arith.constant 0 : index
    %11 = vector.load %arg5[%c0_10, %c0_11] : memref<1x128xf32, #tpu.memory_space<vmem>>, vector<1x128xf32>
    %12 = vector.shape_cast %11 : vector<1x128xf32> to vector<1x128xf32>
    %13 = vector.broadcast %12 : vector<1x128xf32> to vector<8x128xf32>
    %c0_12 = arith.constant 0 : index
    %c0_13 = arith.constant 0 : index
    %14 = vector.load %arg8[%c0_12, %c0_13] : memref<8x128xf32, #tpu.memory_space<vmem>>, vector<8x128xf32>
    %c0_i32_14 = arith.constant 0 : i32
    %c8_i32 = arith.constant 8 : i32
    %15 = arith.muli %c0_i32_14, %c8_i32 : i32
    %16 = tpu.assume_multiple %15, 8 : i32
    %17 = arith.index_cast %16 : i32 to index
    %c0_15 = arith.constant 0 : index
    %18 = vector.load %arg7[%17, %c0_15] : memref<32x384xf32, #tpu.memory_space<vmem>>, vector<8x384xf32>
    %19 = arith.truncf %14 : vector<8x128xf32> to vector<8x128xbf16>
    %cst_16 = arith.constant dense<0.000000e+00> : vector<8x384xf32>
    %20 = tpu.matmul %19, %10, %cst_16 {dimension_numbers = #tpu.dot_dimension_numbers<[1], [0], [0], [1], [0, 0, 1, 1], [], []>} : vector<8x128xbf16>, vector<128x384xbf16>, vector<8x384xf32> -> vector<8x384xf32>
    %21 = vector.extract_strided_slice %18 {offsets = [0, 0], sizes = [8, 128], strides = [1, 1]} : vector<8x384xf32> to vector<8x128xf32>
    %22 = vector.extract_strided_slice %20 {offsets = [0, 0], sizes = [8, 128], strides = [1, 1]} : vector<8x384xf32> to vector<8x128xf32>
    %23 = arith.addf %21, %22 : vector<8x128xf32>
    %24 = arith.negf %23 : vector<8x128xf32>
    %25 = math.exp %24 : vector<8x128xf32>
    %cst_17 = arith.constant 1.000000e+00 : f32
    %26 = vector.broadcast %cst_17 : f32 to vector<8x128xf32>
    %27 = arith.addf %26, %25 : vector<8x128xf32>
    %28 = arith.divf %26, %27 : vector<8x128xf32>
    %29 = vector.extract_strided_slice %18 {offsets = [0, 128], sizes = [8, 128], strides = [1, 1]} : vector<8x384xf32> to vector<8x128xf32>
    %30 = vector.extract_strided_slice %20 {offsets = [0, 128], sizes = [8, 128], strides = [1, 1]} : vector<8x384xf32> to vector<8x128xf32>
    %31 = arith.addf %29, %30 : vector<8x128xf32>
    %32 = arith.negf %31 : vector<8x128xf32>
    %33 = math.exp %32 : vector<8x128xf32>
    %cst_18 = arith.constant 1.000000e+00 : f32
    %34 = vector.broadcast %cst_18 : f32 to vector<8x128xf32>
    %35 = arith.addf %34, %33 : vector<8x128xf32>
    %36 = arith.divf %34, %35 : vector<8x128xf32>
    %37 = vector.extract_strided_slice %18 {offsets = [0, 256], sizes = [8, 128], strides = [1, 1]} : vector<8x384xf32> to vector<8x128xf32>
    %38 = vector.extract_strided_slice %20 {offsets = [0, 256], sizes = [8, 128], strides = [1, 1]} : vector<8x384xf32> to vector<8x128xf32>
    %39 = arith.addf %38, %13 : vector<8x128xf32>
    %40 = arith.mulf %28, %39 : vector<8x128xf32>
    %41 = arith.addf %37, %40 : vector<8x128xf32>
    %42 = math.tanh %41 : vector<8x128xf32>
    %cst_19 = arith.constant 1.000000e+00 : f32
    %43 = vector.broadcast %cst_19 : f32 to vector<8x128xf32>
    %44 = arith.subf %43, %36 : vector<8x128xf32>
    %45 = arith.mulf %44, %42 : vector<8x128xf32>
    %46 = arith.mulf %36, %14 : vector<8x128xf32>
    %47 = arith.addf %45, %46 : vector<8x128xf32>
    %48 = arith.truncf %47 : vector<8x128xf32> to vector<8x128xbf16>
    %49 = arith.index_cast %16 : i32 to index
    %c0_20 = arith.constant 0 : index
    %50 = vector.load %arg6[%49, %c0_20] : memref<32x128xbf16, #tpu.memory_space<vmem>>, vector<8x128xbf16>
    tpu.vector_store %arg6[%49, %c0_20], %48 {strides = array<i32>} : memref<32x128xbf16, #tpu.memory_space<vmem>>, vector<8x128xbf16>,
    %c1_i32 = arith.constant 1 : i32
    %c8_i32_21 = arith.constant 8 : i32
    %51 = arith.muli %c1_i32, %c8_i32_21 : i32
    %52 = tpu.assume_multiple %51, 8 : i32
    %53 = arith.index_cast %52 : i32 to index
    %c0_22 = arith.constant 0 : index
    %54 = vector.load %arg7[%53, %c0_22] : memref<32x384xf32, #tpu.memory_space<vmem>>, vector<8x384xf32>
    %55 = arith.truncf %47 : vector<8x128xf32> to vector<8x128xbf16>
    %cst_23 = arith.constant dense<0.000000e+00> : vector<8x384xf32>
    %56 = tpu.matmul %55, %10, %cst_23 {dimension_numbers = #tpu.dot_dimension_numbers<[1], [0], [0], [1], [0, 0, 1, 1], [], []>} : vector<8x128xbf16>, vector<128x384xbf16>, vector<8x384xf32> -> vector<8x384xf32>
    %57 = vector.extract_strided_slice %54 {offsets = [0, 0], sizes = [8, 128], strides = [1, 1]} : vector<8x384xf32> to vector<8x128xf32>
    %58 = vector.extract_strided_slice %56 {offsets = [0, 0], sizes = [8, 128], strides = [1, 1]} : vector<8x384xf32> to vector<8x128xf32>
    %59 = arith.addf %57, %58 : vector<8x128xf32>
    %60 = arith.negf %59 : vector<8x128xf32>
    %61 = math.exp %60 : vector<8x128xf32>
    %cst_24 = arith.constant 1.000000e+00 : f32
    %62 = vector.broadcast %cst_24 : f32 to vector<8x128xf32>
    %63 = arith.addf %62, %61 : vector<8x128xf32>
    %64 = arith.divf %62, %63 : vector<8x128xf32>
    %65 = vector.extract_strided_slice %54 {offsets = [0, 128], sizes = [8, 128], strides = [1, 1]} : vector<8x384xf32> to vector<8x128xf32>
    %66 = vector.extract_strided_slice %56 {offsets = [0, 128], sizes = [8, 128], strides = [1, 1]} : vector<8x384xf32> to vector<8x128xf32>
    %67 = arith.addf %65, %66 : vector<8x128xf32>
    %68 = arith.negf %67 : vector<8x128xf32>
    %69 = math.exp %68 : vector<8x128xf32>
    %cst_25 = arith.constant 1.000000e+00 : f32
    %70 = vector.broadcast %cst_25 : f32 to vector<8x128xf32>
    %71 = arith.addf %70, %69 : vector<8x128xf32>
    %72 = arith.divf %70, %71 : vector<8x128xf32>
    %73 = vector.extract_strided_slice %54 {offsets = [0, 256], sizes = [8, 128], strides = [1, 1]} : vector<8x384xf32> to vector<8x128xf32>
    %74 = vector.extract_strided_slice %56 {offsets = [0, 256], sizes = [8, 128], strides = [1, 1]} : vector<8x384xf32> to vector<8x128xf32>
    %75 = arith.addf %74, %13 : vector<8x128xf32>
    %76 = arith.mulf %64, %75 : vector<8x128xf32>
    %77 = arith.addf %73, %76 : vector<8x128xf32>
    %78 = math.tanh %77 : vector<8x128xf32>
    %cst_26 = arith.constant 1.000000e+00 : f32
    %79 = vector.broadcast %cst_26 : f32 to vector<8x128xf32>
    %80 = arith.subf %79, %72 : vector<8x128xf32>
    %81 = arith.mulf %80, %78 : vector<8x128xf32>
    %82 = arith.mulf %72, %47 : vector<8x128xf32>
    %83 = arith.addf %81, %82 : vector<8x128xf32>
    %84 = arith.truncf %83 : vector<8x128xf32> to vector<8x128xbf16>
    %85 = arith.index_cast %52 : i32 to index
    %c0_27 = arith.constant 0 : index
    %86 = vector.load %arg6[%85, %c0_27] : memref<32x128xbf16, #tpu.memory_space<vmem>>, vector<8x128xbf16>
    tpu.vector_store %arg6[%85, %c0_27], %84 {strides = array<i32>} : memref<32x128xbf16, #tpu.memory_space<vmem>>, vector<8x128xbf16>,
    %c2_i32 = arith.constant 2 : i32
    %c8_i32_28 = arith.constant 8 : i32
    %87 = arith.muli %c2_i32, %c8_i32_28 : i32
    %88 = tpu.assume_multiple %87, 8 : i32
    %89 = arith.index_cast %88 : i32 to index
    %c0_29 = arith.constant 0 : index
    %90 = vector.load %arg7[%89, %c0_29] : memref<32x384xf32, #tpu.memory_space<vmem>>, vector<8x384xf32>
    %91 = arith.truncf %83 : vector<8x128xf32> to vector<8x128xbf16>
    %cst_30 = arith.constant dense<0.000000e+00> : vector<8x384xf32>
    %92 = tpu.matmul %91, %10, %cst_30 {dimension_numbers = #tpu.dot_dimension_numbers<[1], [0], [0], [1], [0, 0, 1, 1], [], []>} : vector<8x128xbf16>, vector<128x384xbf16>, vector<8x384xf32> -> vector<8x384xf32>
    %93 = vector.extract_strided_slice %90 {offsets = [0, 0], sizes = [8, 128], strides = [1, 1]} : vector<8x384xf32> to vector<8x128xf32>
    %94 = vector.extract_strided_slice %92 {offsets = [0, 0], sizes = [8, 128], strides = [1, 1]} : vector<8x384xf32> to vector<8x128xf32>
    %95 = arith.addf %93, %94 : vector<8x128xf32>
    %96 = arith.negf %95 : vector<8x128xf32>
    %97 = math.exp %96 : vector<8x128xf32>
    %cst_31 = arith.constant 1.000000e+00 : f32
    %98 = vector.broadcast %cst_31 : f32 to vector<8x128xf32>
    %99 = arith.addf %98, %97 : vector<8x128xf32>
    %100 = arith.divf %98, %99 : vector<8x128xf32>
    %101 = vector.extract_strided_slice %90 {offsets = [0, 128], sizes = [8, 128], strides = [1, 1]} : vector<8x384xf32> to vector<8x128xf32>
    %102 = vector.extract_strided_slice %92 {offsets = [0, 128], sizes = [8, 128], strides = [1, 1]} : vector<8x384xf32> to vector<8x128xf32>
    %103 = arith.addf %101, %102 : vector<8x128xf32>
    %104 = arith.negf %103 : vector<8x128xf32>
    %105 = math.exp %104 : vector<8x128xf32>
    %cst_32 = arith.constant 1.000000e+00 : f32
    %106 = vector.broadcast %cst_32 : f32 to vector<8x128xf32>
    %107 = arith.addf %106, %105 : vector<8x128xf32>
    %108 = arith.divf %106, %107 : vector<8x128xf32>
    %109 = vector.extract_strided_slice %90 {offsets = [0, 256], sizes = [8, 128], strides = [1, 1]} : vector<8x384xf32> to vector<8x128xf32>
    %110 = vector.extract_strided_slice %92 {offsets = [0, 256], sizes = [8, 128], strides = [1, 1]} : vector<8x384xf32> to vector<8x128xf32>
    %111 = arith.addf %110, %13 : vector<8x128xf32>
    %112 = arith.mulf %100, %111 : vector<8x128xf32>
    %113 = arith.addf %109, %112 : vector<8x128xf32>
    %114 = math.tanh %113 : vector<8x128xf32>
    %cst_33 = arith.constant 1.000000e+00 : f32
    %115 = vector.broadcast %cst_33 : f32 to vector<8x128xf32>
    %116 = arith.subf %115, %108 : vector<8x128xf32>
    %117 = arith.mulf %116, %114 : vector<8x128xf32>
    %118 = arith.mulf %108, %83 : vector<8x128xf32>
    %119 = arith.addf %117, %118 : vector<8x128xf32>
    %120 = arith.truncf %119 : vector<8x128xf32> to vector<8x128xbf16>
    %121 = arith.index_cast %88 : i32 to index
    %c0_34 = arith.constant 0 : index
    %122 = vector.load %arg6[%121, %c0_34] : memref<32x128xbf16, #tpu.memory_space<vmem>>, vector<8x128xbf16>
    tpu.vector_store %arg6[%121, %c0_34], %120 {strides = array<i32>} : memref<32x128xbf16, #tpu.memory_space<vmem>>, vector<8x128xbf16>,
    %c3_i32 = arith.constant 3 : i32
    %c8_i32_35 = arith.constant 8 : i32
    %123 = arith.muli %c3_i32, %c8_i32_35 : i32
    %124 = tpu.assume_multiple %123, 8 : i32
    %125 = arith.index_cast %124 : i32 to index
    %c0_36 = arith.constant 0 : index
    %126 = vector.load %arg7[%125, %c0_36] : memref<32x384xf32, #tpu.memory_space<vmem>>, vector<8x384xf32>
    %127 = arith.truncf %119 : vector<8x128xf32> to vector<8x128xbf16>
    %cst_37 = arith.constant dense<0.000000e+00> : vector<8x384xf32>
    %128 = tpu.matmul %127, %10, %cst_37 {dimension_numbers = #tpu.dot_dimension_numbers<[1], [0], [0], [1], [0, 0, 1, 1], [], []>} : vector<8x128xbf16>, vector<128x384xbf16>, vector<8x384xf32> -> vector<8x384xf32>
    %129 = vector.extract_strided_slice %126 {offsets = [0, 0], sizes = [8, 128], strides = [1, 1]} : vector<8x384xf32> to vector<8x128xf32>
    %130 = vector.extract_strided_slice %128 {offsets = [0, 0], sizes = [8, 128], strides = [1, 1]} : vector<8x384xf32> to vector<8x128xf32>
    %131 = arith.addf %129, %130 : vector<8x128xf32>
    %132 = arith.negf %131 : vector<8x128xf32>
    %133 = math.exp %132 : vector<8x128xf32>
    %cst_38 = arith.constant 1.000000e+00 : f32
    %134 = vector.broadcast %cst_38 : f32 to vector<8x128xf32>
    %135 = arith.addf %134, %133 : vector<8x128xf32>
    %136 = arith.divf %134, %135 : vector<8x128xf32>
    %137 = vector.extract_strided_slice %126 {offsets = [0, 128], sizes = [8, 128], strides = [1, 1]} : vector<8x384xf32> to vector<8x128xf32>
    %138 = vector.extract_strided_slice %128 {offsets = [0, 128], sizes = [8, 128], strides = [1, 1]} : vector<8x384xf32> to vector<8x128xf32>
    %139 = arith.addf %137, %138 : vector<8x128xf32>
    %140 = arith.negf %139 : vector<8x128xf32>
    %141 = math.exp %140 : vector<8x128xf32>
    %cst_39 = arith.constant 1.000000e+00 : f32
    %142 = vector.broadcast %cst_39 : f32 to vector<8x128xf32>
    %143 = arith.addf %142, %141 : vector<8x128xf32>
    %144 = arith.divf %142, %143 : vector<8x128xf32>
    %145 = vector.extract_strided_slice %126 {offsets = [0, 256], sizes = [8, 128], strides = [1, 1]} : vector<8x384xf32> to vector<8x128xf32>
    %146 = vector.extract_strided_slice %128 {offsets = [0, 256], sizes = [8, 128], strides = [1, 1]} : vector<8x384xf32> to vector<8x128xf32>
    %147 = arith.addf %146, %13 : vector<8x128xf32>
    %148 = arith.mulf %136, %147 : vector<8x128xf32>
    %149 = arith.addf %145, %148 : vector<8x128xf32>
    %150 = math.tanh %149 : vector<8x128xf32>
    %cst_40 = arith.constant 1.000000e+00 : f32
    %151 = vector.broadcast %cst_40 : f32 to vector<8x128xf32>
    %152 = arith.subf %151, %144 : vector<8x128xf32>
    %153 = arith.mulf %152, %150 : vector<8x128xf32>
    %154 = arith.mulf %144, %119 : vector<8x128xf32>
    %155 = arith.addf %153, %154 : vector<8x128xf32>
    %156 = arith.truncf %155 : vector<8x128xf32> to vector<8x128xbf16>
    %157 = arith.index_cast %124 : i32 to index
    %c0_41 = arith.constant 0 : index
    %158 = vector.load %arg6[%157, %c0_41] : memref<32x128xbf16, #tpu.memory_space<vmem>>, vector<8x128xbf16>
    tpu.vector_store %arg6[%157, %c0_41], %156 {strides = array<i32>} : memref<32x128xbf16, #tpu.memory_space<vmem>>, vector<8x128xbf16>,
    %c4_i32 = arith.constant 4 : i32
    %c0_42 = arith.constant 0 : index
    %c0_43 = arith.constant 0 : index
    %159 = vector.load %arg8[%c0_42, %c0_43] : memref<8x128xf32, #tpu.memory_space<vmem>>, vector<8x128xf32>
    tpu.vector_store %arg8[%c0_42, %c0_43], %155 {strides = array<i32>} : memref<8x128xf32, #tpu.memory_space<vmem>>, vector<8x128xf32>,
    return
  }
  func.func @transform_0(%arg0: i32) -> (i32, i32) {
    %c0_i32 = arith.constant 0 : i32
    %c0_i32_0 = arith.constant 0 : i32
    return %arg0, %c0_i32 : i32, i32
  }
  func.func @transform_1(%arg0: i32) -> (i32, i32) {
    %c0_i32 = arith.constant 0 : i32
    %c0_i32_0 = arith.constant 0 : i32
    %c0_i32_1 = arith.constant 0 : i32
    return %c0_i32, %c0_i32_0 : i32, i32
  }
  func.func @transform_2(%arg0: i32) -> (i32, i32) {
    %c0_i32 = arith.constant 0 : i32
    %c0_i32_0 = arith.constant 0 : i32
    %c0_i32_1 = arith.constant 0 : i32
    return %c0_i32, %c0_i32_0 : i32, i32
  }
  func.func @transform_3(%arg0: i32) -> (i32, i32) {
    %c0_i32 = arith.constant 0 : i32
    %c0_i32_0 = arith.constant 0 : i32
    %c0_i32_1 = arith.constant 0 : i32
    return %c0_i32, %c0_i32_0 : i32, i32
  }
  func.func @transform_4(%arg0: i32) -> (i32, i32) {
    %c0_i32 = arith.constant 0 : i32
    %c0_i32_0 = arith.constant 0 : i32
    %c0_i32_1 = arith.constant 0 : i32
    return %c0_i32, %c0_i32_0 : i32, i32
  }
  func.func @transform_5(%arg0: i32) -> (i32, i32) {
    %c0_i32 = arith.constant 0 : i32
    %c0_i32_0 = arith.constant 0 : i32
    return %arg0, %c0_i32 : i32, i32
  }
}

</mosaic_0001>

<llo_original>
// kernel: tpu_custom_call.1
$region0: #{tpu_custom_call.1}
  #allocation0 [shape = 'u32[]', space=smem, size = 0x4, offset = 0x4, fixed_abs, tag = 'smem constant byte address 0x4 - core index']
  #allocation1 [shape = 'u32[144,128]{1,0:T(1,128)}', space=vmem, size = 0x12000, scoped, tag = 'internal scratch']
  #allocation2 [shape = 'f32[32,384]{1,0:T(8,128)}', space=vmem, size = 0xc000, scoped, tag = 'scratch operand']
  #allocation3 [shape = 'f32[8,128]{1,0:T(8,128)}', space=vmem, size = 0x1000, scoped, tag = 'scratch operand']
  %s0 = inlined_call_operand.vmem [shape: bf16[64,16], index: 0, kind: input, shape index: {}]
  %s1 = inlined_call_operand.vmem [shape: bf16[16,384], index: 1, kind: input, shape index: {}]
  %s2 = inlined_call_operand.hbm [shape: bf16[128,384], index: 2, kind: input, shape index: {}]
  %s3 = inlined_call_operand.vmem [shape: f32[1,384], index: 3, kind: input, shape index: {}]
  %s4 = inlined_call_operand.vmem [shape: f32[1,128], index: 4, kind: input, shape index: {}]
  %s5 = inlined_call_operand.hbm [shape: bf16[64,128], index: 5, kind: output, shape index: {}]
  %s6 = sld [smem:[#allocation0]]
  $region61: #{tpu_custom_call.1} parent=0
    _
  %s8 = ssub.s32 1, %s6
  %s9 = scalar_select 0, %s8, %s6
  $region1: #{tpu_custom_call.1} parent=0
    #allocation4 [shape = 'u8[98304]{0}', space=vmem, size = 0x18000, scoped, tag = 'input window, operand 2, single buffered']
    #allocation5 [shape = 's32[2]{0}', space=sflag, size = 0x8, scoped, tag = 'scoped memory for tpu_custom_call.1']
    #allocation6 [shape = 's32[2]{0}', space=sflag, size = 0x8, scoped, tag = 'scoped memory for tpu_custom_call.1']
    #allocation7 [shape = 'u8[16384]{0}', space=vmem, size = 0x4000, scoped, tag = 'output window, operand 0']
    %10 = vsyncpa [#allocation5], 0
    %11 = vsyncpa [#allocation6], 0
    %s12 = scalar_lea.sflag [#allocation6], 1
    %13 = vsyncpa %s12, 0
    loop: start=0, step=1, limit=4
    $region2: #{tpu_custom_call.1} parent=1 // loop_pre_header
      _
    $region3: #{tpu_custom_call.1} parent=1 // loop_header
      %s15 = sphi 0, %s19
      %p16 = scmp.ge.s32.totalorder %s15, 4
      %s25 = sphi 0, %s27
      %s28 = sphi 0, %s25
      %s29 = sphi 0, %s28
      %s45 = sphi 0, %s29
      %s49 = sphi 0, %s49
      %s51 = sphi 0, %s49
      %s52 = sphi 0, %s51
      %s66 = sphi 0, %s52
      %s70 = sphi 0, %s70
      %s72 = sphi 0, %s70
      %s73 = sphi 0, %s72
      %s87 = sphi 0, %s73
      %s91 = sphi 0, %s91
      %s93 = sphi 0, %s91
      %s94 = sphi 0, %s93
      %s108 = sphi 0, %s94
      %s112 = sphi 0, %s112
      %s114 = sphi 0, %s112
      %s115 = sphi 0, %s114
      %s129 = sphi 0, %s115
      %s135 = sphi 0, %s137
      %s138 = sphi 0, %s135
      %s139 = sphi 0, %s138
      %s155 = sphi 0, %s139
    $region4: #{tpu_custom_call.1} parent=1 // loop_header_branch
      %18 = sbr.rel (%p16) target = $region8
    $region5: #{tpu_custom_call.1} parent=1 // loop_body
      %s20 = ssub.s32 %s15, 1
      %s21 = ssub.s32 %s15, 2
      %s22 = sadd.s32 %s15, 1
      %s23 = ssub.s32 %s15, %s22
      %p24 = scmp.eq.s32.totalorder %s23, 0
      %s26 = sadd.s32 %s25, 1
      %s27 = scalar_select %p24, %s25, %s26
      %p30 = pneg %p24
      %p31 = scmp.eq.s32.totalorder %s15, 1
      %p32 = por %p30, %p31
      %p33 = scmp.ne.s32.totalorder %s25, %s28
      %p34 = scmp.eq.s32.totalorder %s15, 0
      %p35 = por %p33, %p34
      %p36 = scmp.ne.s32.totalorder %s25, %s28
      %p37 = scmp.eq.s32.totalorder %s20, 1
      %p38 = por %p36, %p37
      %p39 = scmp.ne.s32.totalorder %s28, %s29
      %p40 = scmp.eq.s32.totalorder %s20, 0
      %p41 = por %p39, %p40
      %p42 = scmp.ne.s32.totalorder %s28, %s29
      %p43 = scmp.eq.s32.totalorder %s21, 1
      %p44 = por %p42, %p43
      %p46 = scmp.ne.s32.totalorder %s29, %s45
      %p47 = scmp.eq.s32.totalorder %s21, 0
      %p48 = por %p46, %p47
      %s50 = sadd.s32 %s49, 1
      %p53 = scmp.eq.s32.totalorder %s15, 1
      %p54 = scmp.ne.s32.totalorder %s49, %s51
      %p55 = scmp.eq.s32.totalorder %s15, 0
      %p56 = por %p54, %p55
      %p57 = scmp.ne.s32.totalorder %s49, %s51
      %p58 = scmp.eq.s32.totalorder %s20, 1
      %p59 = por %p57, %p58
      %p60 = scmp.ne.s32.totalorder %s51, %s52
      %p61 = scmp.eq.s32.totalorder %s20, 0
      %p62 = por %p60, %p61
      %p63 = scmp.ne.s32.totalorder %s51, %s52
      %p64 = scmp.eq.s32.totalorder %s21, 1
      %p65 = por %p63, %p64
      %p67 = scmp.ne.s32.totalorder %s52, %s66
      %p68 = scmp.eq.s32.totalorder %s21, 0
      %p69 = por %p67, %p68
      %s71 = sadd.s32 %s70, 1
      %p74 = scmp.eq.s32.totalorder %s15, 1
      %p75 = scmp.ne.s32.totalorder %s70, %s72
      %p76 = scmp.eq.s32.totalorder %s15, 0
      %p77 = por %p75, %p76
      %p78 = scmp.ne.s32.totalorder %s70, %s72
      %p79 = scmp.eq.s32.totalorder %s20, 1
      %p80 = por %p78, %p79
      %p81 = scmp.ne.s32.totalorder %s72, %s73
      %p82 = scmp.eq.s32.totalorder %s20, 0
      %p83 = por %p81, %p82
      %p84 = scmp.ne.s32.totalorder %s72, %s73
      %p85 = scmp.eq.s32.totalorder %s21, 1
      %p86 = por %p84, %p85
      %p88 = scmp.ne.s32.totalorder %s73, %s87
      %p89 = scmp.eq.s32.totalorder %s21, 0
      %p90 = por %p88, %p89
      %s92 = sadd.s32 %s91, 1
      %p95 = scmp.eq.s32.totalorder %s15, 1
      %p96 = scmp.ne.s32.totalorder %s91, %s93
      %p97 = scmp.eq.s32.totalorder %s15, 0
      %p98 = por %p96, %p97
      %p99 = scmp.ne.s32.totalorder %s91, %s93
      %p100 = scmp.eq.s32.totalorder %s20, 1
      %p101 = por %p99, %p100
      %p102 = scmp.ne.s32.totalorder %s93, %s94
      %p103 = scmp.eq.s32.totalorder %s20, 0
      %p104 = por %p102, %p103
      %p105 = scmp.ne.s32.totalorder %s93, %s94
      %p106 = scmp.eq.s32.totalorder %s21, 1
      %p107 = por %p105, %p106
      %p109 = scmp.ne.s32.totalorder %s94, %s108
      %p110 = scmp.eq.s32.totalorder %s21, 0
      %p111 = por %p109, %p110
      %s113 = sadd.s32 %s112, 1
      %p116 = scmp.eq.s32.totalorder %s15, 1
      %p117 = scmp.ne.s32.totalorder %s112, %s114
      %p118 = scmp.eq.s32.totalorder %s15, 0
      %p119 = por %p117, %p118
      %p120 = scmp.ne.s32.totalorder %s112, %s114
      %p121 = scmp.eq.s32.totalorder %s20, 1
      %p122 = por %p120, %p121
      %p123 = scmp.ne.s32.totalorder %s114, %s115
      %p124 = scmp.eq.s32.totalorder %s20, 0
      %p125 = por %p123, %p124
      %p126 = scmp.ne.s32.totalorder %s114, %s115
      %p127 = scmp.eq.s32.totalorder %s21, 1
      %p128 = por %p126, %p127
      %p130 = scmp.ne.s32.totalorder %s115, %s129
      %p131 = scmp.eq.s32.totalorder %s21, 0
      %p132 = por %p130, %p131
      %s133 = ssub.s32 %s15, %s22
      %p134 = scmp.eq.s32.totalorder %s133, 0
      %s136 = sadd.s32 %s135, 1
      %s137 = scalar_select %p134, %s135, %s136
      %p140 = pneg %p134
      %p141 = scmp.eq.s32.totalorder %s15, 1
      %p142 = por %p140, %p141
      %p143 = scmp.ne.s32.totalorder %s135, %s138
      %p144 = scmp.eq.s32.totalorder %s15, 0
      %p145 = por %p143, %p144
      %p146 = scmp.ne.s32.totalorder %s135, %s138
      %p147 = scmp.eq.s32.totalorder %s20, 1
      %p148 = por %p146, %p147
      %p149 = scmp.ne.s32.totalorder %s138, %s139
      %p150 = scmp.eq.s32.totalorder %s20, 0
      %p151 = por %p149, %p150
      %p152 = scmp.ne.s32.totalorder %s138, %s139
      %p153 = scmp.eq.s32.totalorder %s21, 1
      %p154 = por %p152, %p153
      %p156 = scmp.ne.s32.totalorder %s139, %s155
      %p157 = scmp.eq.s32.totalorder %s21, 0
      %p158 = por %p156, %p157
      %p159 = scmp.le.s32.totalorder 1, %s15
      %p160 = scmp.lt.s32.totalorder %s15, 3
      %p161 = pnand %p159, %p160
      %p162 = pneg %p161
      // Predicated region
      $region9: #{tpu_custom_call.1} parent=5 // pred_check
        _
      $region10: #{tpu_custom_call.1} parent=5 // pred_check_branch
        %164 = sbr.rel (%p161) target = $region12
      $region11: #{tpu_custom_call.1} parent=5 // pred_region
        %s165 = ssub.s32 %s15, 1
        // Predicated region
        $region13: #{tpu_custom_call.1} parent=11 // pred_check
          %p166 = pneg %p62
        $region14: #{tpu_custom_call.1} parent=11 // pred_check_branch
          %168 = sbr.rel (%p166) target = $region16
        $region15: #{tpu_custom_call.1} parent=11 // pred_region
          _
        $region16: #{tpu_custom_call.1} parent=11 // pred_fallthru
          _
        // Predicated region
        $region17: #{tpu_custom_call.1} parent=11 // pred_check
          %p169 = pneg %p83
        $region18: #{tpu_custom_call.1} parent=11 // pred_check_branch
          %171 = sbr.rel (%p169) target = $region20
        $region19: #{tpu_custom_call.1} parent=11 // pred_region
          %s173 = ssub.s32 3072, 3072
          %174 = vsyncadd [#allocation5], %s173
          %s175 = sshll.u32 [#allocation4], 4
          %s176 = int_to_ptr.vmem [resolvable:$true] %s175
          %181 = dma.hbm_to_vmem [thread:$0]  %s2, 3072, %s176, [#allocation5], 192, 192, 12
        $region20: #{tpu_custom_call.1} parent=11 // pred_fallthru
          _
        // Predicated region
        $region21: #{tpu_custom_call.1} parent=11 // pred_check
          %p182 = pneg %p104
        $region22: #{tpu_custom_call.1} parent=11 // pred_check_branch
          %184 = sbr.rel (%p182) target = $region24
        $region23: #{tpu_custom_call.1} parent=11 // pred_region
          _
        $region24: #{tpu_custom_call.1} parent=11 // pred_fallthru
          _
        // Predicated region
        $region25: #{tpu_custom_call.1} parent=11 // pred_check
          %p185 = pneg %p125
        $region26: #{tpu_custom_call.1} parent=11 // pred_check_branch
          %187 = sbr.rel (%p185) target = $region28
        $region27: #{tpu_custom_call.1} parent=11 // pred_region
          _
        $region28: #{tpu_custom_call.1} parent=11 // pred_fallthru
          _
      $region12: #{tpu_custom_call.1} parent=5 // pred_fallthru
        _
      %p188 = scmp.lt.s32.totalorder %s15, 2
      // Predicated region
      $region29: #{tpu_custom_call.1} parent=5 // pred_check
        %p189 = pneg %p188
      $region30: #{tpu_custom_call.1} parent=5 // pred_check_branch
        %191 = sbr.rel (%p189) target = $region32
      $region31: #{tpu_custom_call.1} parent=5 // pred_region
        // Predicated region
        $region33: #{tpu_custom_call.1} parent=31 // pred_check
          %p192 = pneg %p35
        $region34: #{tpu_custom_call.1} parent=31 // pred_check_branch
          %194 = sbr.rel (%p192) target = $region36
        $region35: #{tpu_custom_call.1} parent=31 // pred_region
          %s195 = smul.u32 4, %s15
          %p196 = scmp.lt.s32.totalorder %s195, 7
          %s197 = scalar_select %p196, %s195, 7
          %s198 = smul.addr %s197, 4
          %s199 = scalar_lea.vmem %s0, %s198
          %s200 = smul.u32 4, %s15
        $region36: #{tpu_custom_call.1} parent=31 // pred_fallthru
          _
      $region32: #{tpu_custom_call.1} parent=5 // pred_fallthru
        _
      %p201 = scmp.le.s32.totalorder 1, %s15
      %p202 = scmp.lt.s32.totalorder %s15, 3
      %p203 = pnand %p201, %p202
      %p204 = pneg %p203
      // Predicated region
      $region37: #{tpu_custom_call.1} parent=5 // pred_check
        _
      $region38: #{tpu_custom_call.1} parent=5 // pred_check_branch
        %206 = sbr.rel (%p203) target = $region40
      $region39: #{tpu_custom_call.1} parent=5 // pred_region
        %s207 = ssub.s32 %s15, 1
        // Predicated region
        $region41: #{tpu_custom_call.1} parent=39 // pred_check
          %p208 = pneg %p83
        $region42: #{tpu_custom_call.1} parent=39 // pred_check_branch
          %210 = sbr.rel (%p208) target = $region44
        $region43: #{tpu_custom_call.1} parent=39 // pred_region
          %211 = dma.done [#allocation5], 3072
        $region44: #{tpu_custom_call.1} parent=39 // pred_fallthru
          _
        %s212 = smul.u32 4, %s20
        %p213 = scmp.lt.s32.totalorder %s212, 7
        %s214 = scalar_select %p213, %s212, 7
        %s215 = smul.addr %s214, 4
        %s216 = scalar_lea.vmem %s0, %s215
        %p217 = pneg %p41
        %p218 = pneg %p38
        %p219 = pneg %p62
        %p220 = pneg %p59
        %p221 = pneg %p83
        %p222 = pneg %p80
        %p223 = pneg %p104
        %p224 = pneg %p101
        %p225 = pneg %p125
        %p226 = pneg %p122
        %p227 = pneg %p151
        %p228 = pneg %p148
        %s229 = sand.u32 %s138, 1
        %s230 = scalar_lea.sflag [#allocation6], %s229
        %s231 = sand.u32 %s138, 1
        %s232 = smul.addr %s231, 16
        %s233 = scalar_lea.vmem [#allocation7], %s232
        %s234 = smul.u32 4, %s20
        %p235 = scmp.lt.s32.totalorder %s234, 7
        %s236 = scalar_select %p235, %s234, 7
        %s237 = smul.addr %s236, 4
        %s238 = scalar_lea.vmem %s0, %s237
        %s239 = smul.u32 4, %s20
        %s240 = smul.u32 4, %s20
        %p242 = scmp.eq.s32.totalorder %s20, 0
        // Predicated region
        $region45: #{tpu_custom_call.1} parent=39 // pred_check
          %p243 = pneg %p242
        $region46: #{tpu_custom_call.1} parent=39 // pred_check_branch
          %245 = sbr.rel (%p243) target = $region48
        $region47: #{tpu_custom_call.1} parent=39 // pred_region
          %246 = vst [vmem:[#allocation3] sm:$0xff] 0.0
        $region48: #{tpu_custom_call.1} parent=39 // pred_fallthru
          _
        %v247 = vld [vmem:[%s238] sm:$0xf]
        %v248 = vld [vmem:[%s238 + $0x4] sm:$0xf]
        %v249 = vld [vmem:[%s238 + $0x8] sm:$0xf]
        %v250 = vld [vmem:[%s238 + $0xc] sm:$0xf]
        %v251 = vld [vmem:[%s1] sm:$0xff]
        %v252 = vld [vmem:[%s1 + $0x8] sm:$0xf]
        %v253 = vld [vmem:[%s1 + $0xc] sm:$0xff]
        %v254 = vld [vmem:[%s1 + $0x14] sm:$0xf]
        %v255 = vld [vmem:[%s3] sm:$0x7]
        %v257 = vlaneseq
        %v258 = vshrl.u32 %v257, 7
        %v259 = vsub.s32 0, %v258
        %v260 = vrot.slane %v255, %v259
        %v261 = vlaneseq
        %v262 = vshrl.u32 %v261, 7
        %v263 = vsub.s32 1, %v262
        %v264 = vrot.slane %v255, %v263
        %v265 = vlaneseq
        %v266 = vshrl.u32 %v265, 7
        %v267 = vsub.s32 2, %v266
        %v268 = vrot.slane %v255, %v267
        %v276 = vunpack.c.l.b16 %v247
        %v277 = vunpack.c.l.b16 %v248
        %v278 = vunpack.c.l.b16 %v249
        %v279 = vunpack.c.l.b16 %v250
        %v280 = vpack.c.b16 %v277, %v276
        %v281 = vpack.c.b16 %v279, %v278
        %v286 = vunpack.c.l.b16 %v251
        %v287 = vunpack.c.h.b16 %v251
        %v288 = vunpack.c.l.b16 %v252
        %v289 = vunpack.c.l.b16 %v253
        %v290 = vunpack.c.h.b16 %v253
        %v291 = vunpack.c.l.b16 %v254
        %v292 = vpack.c.b16 %v289, %v286
        %v293 = vpack.c.b16 %v290, %v287
        %v294 = vpack.c.b16 %v291, %v288
        %vm298 = vcmask 130048
        %v300 = vsel %vm298, %v280, 0
        %v303 = vsel %vm298, %v281, 0
        %305 = vmatprep.subr.bf16.mxu0 0
        %306 = vmatpush1.bf16.msra.mxu0 0
        %307 = vmatprep.subr.bf16.mxu0 0
        %308 = vmatpush1.bf16.msra.mxu0 0
        %309 = vmatprep.subr.bf16.mxu0 0
        %310 = vmatpush1.bf16.msra.mxu0 0
        %311 = vmatprep.subr.bf16.mxu0 0
        %312 = vmatpush1.bf16.msra.mxu0 0
        %313 = vmatprep.subr.bf16.mxu0 0
        %314 = vmatpush1.bf16.msra.mxu0 0
        %315 = vmatprep.subr.bf16.mxu0 0
        %316 = vmatpush1.bf16.msra.mxu0 0
        %317 = vmatprep.subr.bf16.mxu0 0
        %318 = vmatpush1.bf16.msra.mxu0 0
        %319 = vmatprep.subr.bf16.mxu0 %v293
        %320 = vmatpush1.bf16.msra.mxu0 %v292
        %321 = vmatprep.subr.bf16.mxu0 0
        %322 = vmatpush2.bf16.msra.mxu0 0
        %323 = vmatprep.subr.bf16.mxu0 0
        %324 = vmatpush2.bf16.msra.mxu0 0
        %325 = vmatprep.subr.bf16.mxu0 0
        %326 = vmatpush2.bf16.msra.mxu0 0
        %327 = vmatprep.subr.bf16.mxu0 0
        %328 = vmatpush2.bf16.msra.mxu0 0
        %329 = vmatprep.subr.bf16.mxu0 0
        %330 = vmatpush2.bf16.msra.mxu0 0
        %331 = vmatprep.subr.bf16.mxu0 0
        %332 = vmatpush2.bf16.msra.mxu0 0
        %333 = vmatprep.subr.bf16.mxu0 0
        %334 = vmatpush2.bf16.msra.mxu0 0
        %335 = vmatprep.subr.bf16.mxu0 0
        %336 = vmatpush2.bf16.msra.mxu0 0
        %337 = vmatprep.mubr.bf16.mxu0 0
        %338 = vmatmul.mubr.bf16.gmra.mxu0 %v300
        %v339 = vpop.f32.mrf.mxu0
        %v340 = vadd.f32 %v260, %v339
        %v341 = vpop.f32.mrf.mxu0
        %v342 = vadd.f32 %v264, %v341
        %v343 = vpop.f32.mrf.mxu0
        %v344 = vadd.f32 %v260, %v343
        %v345 = vpop.f32.mrf.mxu0
        %v346 = vadd.f32 %v264, %v345
        %347 = vmatprep.mubr.bf16.mxu0 0
        %348 = vmatmul.mubr.bf16.gmra.mxu0 %v303
        %v349 = vpop.f32.mrf.mxu0
        %v350 = vadd.f32 %v260, %v349
        %v351 = vpop.f32.mrf.mxu0
        %v352 = vadd.f32 %v264, %v351
        %v353 = vpop.f32.mrf.mxu0
        %v354 = vadd.f32 %v260, %v353
        %v355 = vpop.f32.mrf.mxu0
        %v356 = vadd.f32 %v264, %v355
        %357 = vdwg.mxu0
        %358 = vmatprep.subr.bf16.mxu0 0
        %359 = vmatpush1.bf16.msra.mxu0 0
        %360 = vmatprep.subr.bf16.mxu0 0
        %361 = vmatpush1.bf16.msra.mxu0 0
        %362 = vmatprep.subr.bf16.mxu0 0
        %363 = vmatpush1.bf16.msra.mxu0 0
        %364 = vmatprep.subr.bf16.mxu0 0
        %365 = vmatpush1.bf16.msra.mxu0 0
        %366 = vmatprep.subr.bf16.mxu0 0
        %367 = vmatpush1.bf16.msra.mxu0 0
        %368 = vmatprep.subr.bf16.mxu0 0
        %369 = vmatpush1.bf16.msra.mxu0 0
        %370 = vmatprep.subr.bf16.mxu0 0
        %371 = vmatpush1.bf16.msra.mxu0 0
        %372 = vmatprep.subr.bf16.mxu0 0
        %373 = vmatpush1.bf16.msra.mxu0 %v294
        %374 = vmatprep.subr.bf16.mxu0 0
        %375 = vmatpush2.bf16.msra.mxu0 0
        %376 = vmatprep.subr.bf16.mxu0 0
        %377 = vmatpush2.bf16.msra.mxu0 0
        %378 = vmatprep.subr.bf16.mxu0 0
        %379 = vmatpush2.bf16.msra.mxu0 0
        %380 = vmatprep.subr.bf16.mxu0 0
        %381 = vmatpush2.bf16.msra.mxu0 0
        %382 = vmatprep.subr.bf16.mxu0 0
        %383 = vmatpush2.bf16.msra.mxu0 0
        %384 = vmatprep.subr.bf16.mxu0 0
        %385 = vmatpush2.bf16.msra.mxu0 0
        %386 = vmatprep.subr.bf16.mxu0 0
        %387 = vmatpush2.bf16.msra.mxu0 0
        %388 = vmatprep.subr.bf16.mxu0 0
        %389 = vmatpush2.bf16.msra.mxu0 0
        %390 = vmatprep.mubr.bf16.mxu0 0
        %391 = vmatmul.mubr.bf16.gmra.mxu0 %v300
        %v392 = vpop.f32.mrf.mxu0
        %v393 = vadd.f32 %v268, %v392
        %v394 = vpop.f32.mrf.mxu0
        %v395 = vpop.f32.mrf.mxu0
        %v396 = vadd.f32 %v268, %v395
        %v397 = vpop.f32.mrf.mxu0
        %398 = vmatprep.mubr.bf16.mxu0 0
        %399 = vmatmul.mubr.bf16.gmra.mxu0 %v303
        %v400 = vpop.f32.mrf.mxu0
        %v401 = vadd.f32 %v268, %v400
        %v402 = vpop.f32.mrf.mxu0
        %v403 = vpop.f32.mrf.mxu0
        %v404 = vadd.f32 %v268, %v403
        %v405 = vpop.f32.mrf.mxu0
        %406 = vdwg.mxu0
        %407 = vst [vmem:[#allocation2] sm:$0xff] %v340
        %408 = vst [vmem:[#allocation2 + $0x8] sm:$0xff] %v342
        %409 = vst [vmem:[#allocation2 + $0x10] sm:$0xff] %v393
        %410 = vst [vmem:[#allocation2 + $0x18] sm:$0xff] %v344
        %411 = vst [vmem:[#allocation2 + $0x20] sm:$0xff] %v346
        %412 = vst [vmem:[#allocation2 + $0x28] sm:$0xff] %v396
        %413 = vst [vmem:[#allocation2 + $0x30] sm:$0xff] %v350
        %414 = vst [vmem:[#allocation2 + $0x38] sm:$0xff] %v352
        %415 = vst [vmem:[#allocation2 + $0x40] sm:$0xff] %v401
        %416 = vst [vmem:[#allocation2 + $0x48] sm:$0xff] %v354
        %417 = vst [vmem:[#allocation2 + $0x50] sm:$0xff] %v356
        %418 = vst [vmem:[#allocation2 + $0x58] sm:$0xff] %v404
        %v419 = vld [vmem:[#allocation4] sm:$0xff]
        %v420 = vld [vmem:[#allocation4 + $0x8] sm:$0xf]
        %v421 = vld [vmem:[#allocation4 + $0xc] sm:$0xff]
        %v422 = vld [vmem:[#allocation4 + $0x14] sm:$0xf]
        %v423 = vld [vmem:[#allocation4 + $0x18] sm:$0xff]
        %v424 = vld [vmem:[#allocation4 + $0x20] sm:$0xf]
        %v425 = vld [vmem:[#allocation4 + $0x24] sm:$0xff]
        %v426 = vld [vmem:[#allocation4 + $0x2c] sm:$0xf]
        %v427 = vld [vmem:[#allocation4 + $0x30] sm:$0xff]
        %v428 = vld [vmem:[#allocation4 + $0x38] sm:$0xf]
        %v429 = vld [vmem:[#allocation4 + $0x3c] sm:$0xff]
        %v430 = vld [vmem:[#allocation4 + $0x44] sm:$0xf]
        %v431 = vld [vmem:[#allocation4 + $0x48] sm:$0xff]
        %v432 = vld [vmem:[#allocation4 + $0x50] sm:$0xf]
        %v433 = vld [vmem:[#allocation4 + $0x54] sm:$0xff]
        %v434 = vld [vmem:[#allocation4 + $0x5c] sm:$0xf]
        %v435 = vld [vmem:[#allocation4 + $0x60] sm:$0xff]
        %v436 = vld [vmem:[#allocation4 + $0x68] sm:$0xf]
        %v437 = vld [vmem:[#allocation4 + $0x6c] sm:$0xff]
        %v438 = vld [vmem:[#allocation4 + $0x74] sm:$0xf]
        %v439 = vld [vmem:[#allocation4 + $0x78] sm:$0xff]
        %v440 = vld [vmem:[#allocation4 + $0x80] sm:$0xf]
        %v441 = vld [vmem:[#allocation4 + $0x84] sm:$0xff]
        %v442 = vld [vmem:[#allocation4 + $0x8c] sm:$0xf]
        %v443 = vld [vmem:[#allocation4 + $0x90] sm:$0xff]
        %v444 = vld [vmem:[#allocation4 + $0x98] sm:$0xf]
        %v445 = vld [vmem:[#allocation4 + $0x9c] sm:$0xff]
        %v446 = vld [vmem:[#allocation4 + $0xa4] sm:$0xf]
        %v447 = vld [vmem:[#allocation4 + $0xa8] sm:$0xff]
        %v448 = vld [vmem:[#allocation4 + $0xb0] sm:$0xf]
        %v449 = vld [vmem:[#allocation4 + $0xb4] sm:$0xff]
        %v450 = vld [vmem:[#allocation4 + $0xbc] sm:$0xf]
        %v451 = vld [vmem:[%s4] sm:$0x1]
        %v453 = vlaneseq
        %v454 = vshrl.u32 %v453, 7
        %v455 = vsub.s32 0, %v454
        %v456 = vrot.slane %v451, %v455
        %v458 = vld [vmem:[#allocation3] sm:$0xff]
        %s459 = smul.u32 0, 3
        %s460 = smul.addr %s459, 8
        %s461 = scalar_lea.vmem [#allocation2], %s460
        %v462 = vld [vmem:[%s461] sm:$0xff]
        %v463 = vld [vmem:[%s461 + $0x8] sm:$0xff]
        %v464 = vld [vmem:[%s461 + $0x10] sm:$0xff]
        %v465 = vpack.c.bf16 %v458, %v458
        %v498 = vunpack.c.l.b16 %v419
        %v499 = vunpack.c.h.b16 %v419
        %v500 = vunpack.c.l.b16 %v420
        %v501 = vunpack.c.l.b16 %v421
        %v502 = vunpack.c.h.b16 %v421
        %v503 = vunpack.c.l.b16 %v422
        %v504 = vunpack.c.l.b16 %v423
        %v505 = vunpack.c.h.b16 %v423
        %v506 = vunpack.c.l.b16 %v424
        %v507 = vunpack.c.l.b16 %v425
        %v508 = vunpack.c.h.b16 %v425
        %v509 = vunpack.c.l.b16 %v426
        %v510 = vunpack.c.l.b16 %v427
        %v511 = vunpack.c.h.b16 %v427
        %v512 = vunpack.c.l.b16 %v428
        %v513 = vunpack.c.l.b16 %v429
        %v514 = vunpack.c.h.b16 %v429
        %v515 = vunpack.c.l.b16 %v430
        %v516 = vunpack.c.l.b16 %v431
        %v517 = vunpack.c.h.b16 %v431
        %v518 = vunpack.c.l.b16 %v432
        %v519 = vunpack.c.l.b16 %v433
        %v520 = vunpack.c.h.b16 %v433
        %v521 = vunpack.c.l.b16 %v434
        %v522 = vunpack.c.l.b16 %v435
        %v523 = vunpack.c.h.b16 %v435
        %v524 = vunpack.c.l.b16 %v436
        %v525 = vunpack.c.l.b16 %v437
        %v526 = vunpack.c.h.b16 %v437
        %v527 = vunpack.c.l.b16 %v438
        %v528 = vunpack.c.l.b16 %v439
        %v529 = vunpack.c.h.b16 %v439
        %v530 = vunpack.c.l.b16 %v440
        %v531 = vunpack.c.l.b16 %v441
        %v532 = vunpack.c.h.b16 %v441
        %v533 = vunpack.c.l.b16 %v442
        %v534 = vunpack.c.l.b16 %v443
        %v535 = vunpack.c.h.b16 %v443
        %v536 = vunpack.c.l.b16 %v444
        %v537 = vunpack.c.l.b16 %v445
        %v538 = vunpack.c.h.b16 %v445
        %v539 = vunpack.c.l.b16 %v446
        %v540 = vunpack.c.l.b16 %v447
        %v541 = vunpack.c.h.b16 %v447
        %v542 = vunpack.c.l.b16 %v448
        %v543 = vunpack.c.l.b16 %v449
        %v544 = vunpack.c.h.b16 %v449
        %v545 = vunpack.c.l.b16 %v450
        %v546 = vpack.c.b16 %v501, %v498
        %v547 = vpack.c.b16 %v502, %v499
        %v548 = vpack.c.b16 %v503, %v500
        %v549 = vpack.c.b16 %v507, %v504
        %v550 = vpack.c.b16 %v508, %v505
        %v551 = vpack.c.b16 %v509, %v506
        %v552 = vpack.c.b16 %v513, %v510
        %v553 = vpack.c.b16 %v514, %v511
        %v554 = vpack.c.b16 %v515, %v512
        %v555 = vpack.c.b16 %v519, %v516
        %v556 = vpack.c.b16 %v520, %v517
        %v557 = vpack.c.b16 %v521, %v518
        %v558 = vpack.c.b16 %v525, %v522
        %v559 = vpack.c.b16 %v526, %v523
        %v560 = vpack.c.b16 %v527, %v524
        %v561 = vpack.c.b16 %v531, %v528
        %v562 = vpack.c.b16 %v532, %v529
        %v563 = vpack.c.b16 %v533, %v530
        %v564 = vpack.c.b16 %v537, %v534
        %v565 = vpack.c.b16 %v538, %v535
        %v566 = vpack.c.b16 %v539, %v536
        %v567 = vpack.c.b16 %v543, %v540
        %v568 = vpack.c.b16 %v544, %v541
        %v569 = vpack.c.b16 %v545, %v542
        %594 = vmatprep.subr.bf16.mxu0 %v568
        %595 = vmatpush1.bf16.msra.mxu0 %v567
        %596 = vmatprep.subr.bf16.mxu0 %v565
        %597 = vmatpush1.bf16.msra.mxu0 %v564
        %598 = vmatprep.subr.bf16.mxu0 %v562
        %599 = vmatpush1.bf16.msra.mxu0 %v561
        %600 = vmatprep.subr.bf16.mxu0 %v559
        %601 = vmatpush1.bf16.msra.mxu0 %v558
        %602 = vmatprep.subr.bf16.mxu0 %v556
        %603 = vmatpush1.bf16.msra.mxu0 %v555
        %604 = vmatprep.subr.bf16.mxu0 %v553
        %605 = vmatpush1.bf16.msra.mxu0 %v552
        %606 = vmatprep.subr.bf16.mxu0 %v550
        %607 = vmatpush1.bf16.msra.mxu0 %v549
        %608 = vmatprep.subr.bf16.mxu0 %v547
        %609 = vmatpush1.bf16.msra.mxu0 %v546
        %610 = vmatprep.subr.bf16.mxu0 0
        %611 = vmatpush2.bf16.msra.mxu0 0
        %612 = vmatprep.subr.bf16.mxu0 0
        %613 = vmatpush2.bf16.msra.mxu0 0
        %614 = vmatprep.subr.bf16.mxu0 0
        %615 = vmatpush2.bf16.msra.mxu0 0
        %616 = vmatprep.subr.bf16.mxu0 0
        %617 = vmatpush2.bf16.msra.mxu0 0
        %618 = vmatprep.subr.bf16.mxu0 0
        %619 = vmatpush2.bf16.msra.mxu0 0
        %620 = vmatprep.subr.bf16.mxu0 0
        %621 = vmatpush2.bf16.msra.mxu0 0
        %622 = vmatprep.subr.bf16.mxu0 0
        %623 = vmatpush2.bf16.msra.mxu0 0
        %624 = vmatprep.subr.bf16.mxu0 0
        %625 = vmatpush2.bf16.msra.mxu0 0
        %626 = vmatprep.mubr.bf16.mxu0 0
        %627 = vmatmul.mubr.bf16.gmra.mxu0 %v465
        %v628 = vpop.f32.mrf.mxu0
        %v629 = vadd.f32 0.0, %v628
        %v630 = vpop.f32.mrf.mxu0
        %v631 = vadd.f32 0.0, %v630
        %v632 = vpop.f32.mrf.mxu0
        %v633 = vpop.f32.mrf.mxu0
        %634 = vdwg.mxu0
        %635 = vmatprep.subr.bf16.mxu0 0
        %636 = vmatpush1.bf16.msra.mxu0 %v569
        %637 = vmatprep.subr.bf16.mxu0 0
        %638 = vmatpush1.bf16.msra.mxu0 %v566
        %639 = vmatprep.subr.bf16.mxu0 0
        %640 = vmatpush1.bf16.msra.mxu0 %v563
        %641 = vmatprep.subr.bf16.mxu0 0
        %642 = vmatpush1.bf16.msra.mxu0 %v560
        %643 = vmatprep.subr.bf16.mxu0 0
        %644 = vmatpush1.bf16.msra.mxu0 %v557
        %645 = vmatprep.subr.bf16.mxu0 0
        %646 = vmatpush1.bf16.msra.mxu0 %v554
        %647 = vmatprep.subr.bf16.mxu0 0
        %648 = vmatpush1.bf16.msra.mxu0 %v551
        %649 = vmatprep.subr.bf16.mxu0 0
        %650 = vmatpush1.bf16.msra.mxu0 %v548
        %651 = vmatprep.subr.bf16.mxu0 0
        %652 = vmatpush2.bf16.msra.mxu0 0
        %653 = vmatprep.subr.bf16.mxu0 0
        %654 = vmatpush2.bf16.msra.mxu0 0
        %655 = vmatprep.subr.bf16.mxu0 0
        %656 = vmatpush2.bf16.msra.mxu0 0
        %657 = vmatprep.subr.bf16.mxu0 0
        %658 = vmatpush2.bf16.msra.mxu0 0
        %659 = vmatprep.subr.bf16.mxu0 0
        %660 = vmatpush2.bf16.msra.mxu0 0
        %661 = vmatprep.subr.bf16.mxu0 0
        %662 = vmatpush2.bf16.msra.mxu0 0
        %663 = vmatprep.subr.bf16.mxu0 0
        %664 = vmatpush2.bf16.msra.mxu0 0
        %665 = vmatprep.subr.bf16.mxu0 0
        %666 = vmatpush2.bf16.msra.mxu0 0
        %667 = vmatprep.mubr.bf16.mxu0 0
        %668 = vmatmul.mubr.bf16.gmra.mxu0 %v465
        %v669 = vpop.f32.mrf.mxu0
        %v670 = vadd.f32 0.0, %v669
        %v671 = vpop.f32.mrf.mxu0
        %v672 = vpop.f32.mrf.mxu0
        %v673 = vpop.f32.mrf.mxu0
        %674 = vdwg.mxu0
        %v675 = vadd.f32 %v462, %v629
        %v676 = vxor.u32 %v675, 2147483648
        %v677 = vmul.f32 %v676, 1.442695
        %v678 = vpow.pop %v677
        %v679 = vadd.f32 %v678, 1.0
        %v680 = vrcp.pop %v679
        %v681 = vmul.f32 1.0, %v680
        %v682 = vadd.f32 %v463, %v631
        %v683 = vxor.u32 %v682, 2147483648
        %v684 = vmul.f32 %v683, 1.442695
        %v685 = vpow.pop %v684
        %v686 = vadd.f32 %v685, 1.0
        %v687 = vrcp.pop %v686
        %v688 = vmul.f32 1.0, %v687
        %v689 = vadd.f32 %v670, %v456
        %v690 = vmul.f32 %v681, %v689
        %v691 = vadd.f32 %v464, %v690
        %v692 = vtanh.pop %v691
        %v693 = vsub.f32 1.0, %v688
        %v694 = vmul.f32 %v693, %v692
        %v695 = vmul.f32 %v688, %v458
        %v696 = vadd.f32 %v694, %v695
        %v697 = vpack.c.bf16 %v696, %v696
        %698 = vst [vmem:[%s233] sm:$0xf] %v697
        %s699 = smul.u32 1, 3
        %s700 = smul.addr %s699, 8
        %s701 = scalar_lea.vmem [#allocation2], %s700
        %v702 = vld [vmem:[%s701] sm:$0xff]
        %v703 = vld [vmem:[%s701 + $0x8] sm:$0xff]
        %v704 = vld [vmem:[%s701 + $0x10] sm:$0xff]
        %705 = vmatprep.subr.bf16.mxu0 %v568
        %706 = vmatpush1.bf16.msra.mxu0 %v567
        %707 = vmatprep.subr.bf16.mxu0 %v565
        %708 = vmatpush1.bf16.msra.mxu0 %v564
        %709 = vmatprep.subr.bf16.mxu0 %v562
        %710 = vmatpush1.bf16.msra.mxu0 %v561
        %711 = vmatprep.subr.bf16.mxu0 %v559
        %712 = vmatpush1.bf16.msra.mxu0 %v558
        %713 = vmatprep.subr.bf16.mxu0 %v556
        %714 = vmatpush1.bf16.msra.mxu0 %v555
        %715 = vmatprep.subr.bf16.mxu0 %v553
        %716 = vmatpush1.bf16.msra.mxu0 %v552
        %717 = vmatprep.subr.bf16.mxu0 %v550
        %718 = vmatpush1.bf16.msra.mxu0 %v549
        %719 = vmatprep.subr.bf16.mxu0 %v547
        %720 = vmatpush1.bf16.msra.mxu0 %v546
        %721 = vmatprep.subr.bf16.mxu0 0
        %722 = vmatpush2.bf16.msra.mxu0 0
        %723 = vmatprep.subr.bf16.mxu0 0
        %724 = vmatpush2.bf16.msra.mxu0 0
        %725 = vmatprep.subr.bf16.mxu0 0
        %726 = vmatpush2.bf16.msra.mxu0 0
        %727 = vmatprep.subr.bf16.mxu0 0
        %728 = vmatpush2.bf16.msra.mxu0 0
        %729 = vmatprep.subr.bf16.mxu0 0
        %730 = vmatpush2.bf16.msra.mxu0 0
        %731 = vmatprep.subr.bf16.mxu0 0
        %732 = vmatpush2.bf16.msra.mxu0 0
        %733 = vmatprep.subr.bf16.mxu0 0
        %734 = vmatpush2.bf16.msra.mxu0 0
        %735 = vmatprep.subr.bf16.mxu0 0
        %736 = vmatpush2.bf16.msra.mxu0 0
        %737 = vmatprep.mubr.bf16.mxu0 0
        %738 = vmatmul.mubr.bf16.gmra.mxu0 %v697
        %v739 = vpop.f32.mrf.mxu0
        %v740 = vadd.f32 0.0, %v739
        %v741 = vpop.f32.mrf.mxu0
        %v742 = vadd.f32 0.0, %v741
        %v743 = vpop.f32.mrf.mxu0
        %v744 = vpop.f32.mrf.mxu0
        %745 = vdwg.mxu0
        %746 = vmatprep.subr.bf16.mxu0 0
        %747 = vmatpush1.bf16.msra.mxu0 %v569
        %748 = vmatprep.subr.bf16.mxu0 0
        %749 = vmatpush1.bf16.msra.mxu0 %v566
        %750 = vmatprep.subr.bf16.mxu0 0
        %751 = vmatpush1.bf16.msra.mxu0 %v563
        %752 = vmatprep.subr.bf16.mxu0 0
        %753 = vmatpush1.bf16.msra.mxu0 %v560
        %754 = vmatprep.subr.bf16.mxu0 0
        %755 = vmatpush1.bf16.msra.mxu0 %v557
        %756 = vmatprep.subr.bf16.mxu0 0
        %757 = vmatpush1.bf16.msra.mxu0 %v554
        %758 = vmatprep.subr.bf16.mxu0 0
        %759 = vmatpush1.bf16.msra.mxu0 %v551
        %760 = vmatprep.subr.bf16.mxu0 0
        %761 = vmatpush1.bf16.msra.mxu0 %v548
        %762 = vmatprep.subr.bf16.mxu0 0
        %763 = vmatpush2.bf16.msra.mxu0 0
        %764 = vmatprep.subr.bf16.mxu0 0
        %765 = vmatpush2.bf16.msra.mxu0 0
        %766 = vmatprep.subr.bf16.mxu0 0
        %767 = vmatpush2.bf16.msra.mxu0 0
        %768 = vmatprep.subr.bf16.mxu0 0
        %769 = vmatpush2.bf16.msra.mxu0 0
        %770 = vmatprep.subr.bf16.mxu0 0
        %771 = vmatpush2.bf16.msra.mxu0 0
        %772 = vmatprep.subr.bf16.mxu0 0
        %773 = vmatpush2.bf16.msra.mxu0 0
        %774 = vmatprep.subr.bf16.mxu0 0
        %775 = vmatpush2.bf16.msra.mxu0 0
        %776 = vmatprep.subr.bf16.mxu0 0
        %777 = vmatpush2.bf16.msra.mxu0 0
        %778 = vmatprep.mubr.bf16.mxu0 0
        %779 = vmatmul.mubr.bf16.gmra.mxu0 %v697
        %v780 = vpop.f32.mrf.mxu0
        %v781 = vadd.f32 0.0, %v780
        %v782 = vpop.f32.mrf.mxu0
        %v783 = vpop.f32.mrf.mxu0
        %v784 = vpop.f32.mrf.mxu0
        %785 = vdwg.mxu0
        %v786 = vadd.f32 %v702, %v740
        %v787 = vxor.u32 %v786, 2147483648
        %v788 = vmul.f32 %v787, 1.442695
        %v789 = vpow.pop %v788
        %v790 = vadd.f32 %v789, 1.0
        %v791 = vrcp.pop %v790
        %v792 = vmul.f32 1.0, %v791
        %v793 = vadd.f32 %v703, %v742
        %v794 = vxor.u32 %v793, 2147483648
        %v795 = vmul.f32 %v794, 1.442695
        %v796 = vpow.pop %v795
        %v797 = vadd.f32 %v796, 1.0
        %v798 = vrcp.pop %v797
        %v799 = vmul.f32 1.0, %v798
        %v800 = vadd.f32 %v781, %v456
        %v801 = vmul.f32 %v792, %v800
        %v802 = vadd.f32 %v704, %v801
        %v803 = vtanh.pop %v802
        %v804 = vsub.f32 1.0, %v799
        %v805 = vmul.f32 %v804, %v803
        %v806 = vmul.f32 %v799, %v696
        %v807 = vadd.f32 %v805, %v806
        %v808 = vpack.c.bf16 %v807, %v807
        %s809 = scalar_lea.vmem %s233, 4 [#allocation7]
        %810 = vst [vmem:[%s809] sm:$0xf] %v808
        %s811 = smul.u32 2, 3
        %s812 = smul.addr %s811, 8
        %s813 = scalar_lea.vmem [#allocation2], %s812
        %v814 = vld [vmem:[%s813] sm:$0xff]
        %v815 = vld [vmem:[%s813 + $0x8] sm:$0xff]
        %v816 = vld [vmem:[%s813 + $0x10] sm:$0xff]
        %817 = vmatprep.subr.bf16.mxu0 %v568
        %818 = vmatpush1.bf16.msra.mxu0 %v567
        %819 = vmatprep.subr.bf16.mxu0 %v565
        %820 = vmatpush1.bf16.msra.mxu0 %v564
        %821 = vmatprep.subr.bf16.mxu0 %v562
        %822 = vmatpush1.bf16.msra.mxu0 %v561
        %823 = vmatprep.subr.bf16.mxu0 %v559
        %824 = vmatpush1.bf16.msra.mxu0 %v558
        %825 = vmatprep.subr.bf16.mxu0 %v556
        %826 = vmatpush1.bf16.msra.mxu0 %v555
        %827 = vmatprep.subr.bf16.mxu0 %v553
        %828 = vmatpush1.bf16.msra.mxu0 %v552
        %829 = vmatprep.subr.bf16.mxu0 %v550
        %830 = vmatpush1.bf16.msra.mxu0 %v549
        %831 = vmatprep.subr.bf16.mxu0 %v547
        %832 = vmatpush1.bf16.msra.mxu0 %v546
        %833 = vmatprep.subr.bf16.mxu0 0
        %834 = vmatpush2.bf16.msra.mxu0 0
        %835 = vmatprep.subr.bf16.mxu0 0
        %836 = vmatpush2.bf16.msra.mxu0 0
        %837 = vmatprep.subr.bf16.mxu0 0
        %838 = vmatpush2.bf16.msra.mxu0 0
        %839 = vmatprep.subr.bf16.mxu0 0
        %840 = vmatpush2.bf16.msra.mxu0 0
        %841 = vmatprep.subr.bf16.mxu0 0
        %842 = vmatpush2.bf16.msra.mxu0 0
        %843 = vmatprep.subr.bf16.mxu0 0
        %844 = vmatpush2.bf16.msra.mxu0 0
        %845 = vmatprep.subr.bf16.mxu0 0
        %846 = vmatpush2.bf16.msra.mxu0 0
        %847 = vmatprep.subr.bf16.mxu0 0
        %848 = vmatpush2.bf16.msra.mxu0 0
        %849 = vmatprep.mubr.bf16.mxu0 0
        %850 = vmatmul.mubr.bf16.gmra.mxu0 %v808
        %v851 = vpop.f32.mrf.mxu0
        %v852 = vadd.f32 0.0, %v851
        %v853 = vpop.f32.mrf.mxu0
        %v854 = vadd.f32 0.0, %v853
        %v855 = vpop.f32.mrf.mxu0
        %v856 = vpop.f32.mrf.mxu0
        %857 = vdwg.mxu0
        %858 = vmatprep.subr.bf16.mxu0 0
        %859 = vmatpush1.bf16.msra.mxu0 %v569
        %860 = vmatprep.subr.bf16.mxu0 0
        %861 = vmatpush1.bf16.msra.mxu0 %v566
        %862 = vmatprep.subr.bf16.mxu0 0
        %863 = vmatpush1.bf16.msra.mxu0 %v563
        %864 = vmatprep.subr.bf16.mxu0 0
        %865 = vmatpush1.bf16.msra.mxu0 %v560
        %866 = vmatprep.subr.bf16.mxu0 0
        %867 = vmatpush1.bf16.msra.mxu0 %v557
        %868 = vmatprep.subr.bf16.mxu0 0
        %869 = vmatpush1.bf16.msra.mxu0 %v554
        %870 = vmatprep.subr.bf16.mxu0 0
        %871 = vmatpush1.bf16.msra.mxu0 %v551
        %872 = vmatprep.subr.bf16.mxu0 0
        %873 = vmatpush1.bf16.msra.mxu0 %v548
        %874 = vmatprep.subr.bf16.mxu0 0
        %875 = vmatpush2.bf16.msra.mxu0 0
        %876 = vmatprep.subr.bf16.mxu0 0
        %877 = vmatpush2.bf16.msra.mxu0 0
        %878 = vmatprep.subr.bf16.mxu0 0
        %879 = vmatpush2.bf16.msra.mxu0 0
        %880 = vmatprep.subr.bf16.mxu0 0
        %881 = vmatpush2.bf16.msra.mxu0 0
        %882 = vmatprep.subr.bf16.mxu0 0
        %883 = vmatpush2.bf16.msra.mxu0 0
        %884 = vmatprep.subr.bf16.mxu0 0
        %885 = vmatpush2.bf16.msra.mxu0 0
        %886 = vmatprep.subr.bf16.mxu0 0
        %887 = vmatpush2.bf16.msra.mxu0 0
        %888 = vmatprep.subr.bf16.mxu0 0
        %889 = vmatpush2.bf16.msra.mxu0 0
        %890 = vmatprep.mubr.bf16.mxu0 0
        %891 = vmatmul.mubr.bf16.gmra.mxu0 %v808
        %v892 = vpop.f32.mrf.mxu0
        %v893 = vadd.f32 0.0, %v892
        %v894 = vpop.f32.mrf.mxu0
        %v895 = vpop.f32.mrf.mxu0
        %v896 = vpop.f32.mrf.mxu0
        %897 = vdwg.mxu0
        %v898 = vadd.f32 %v814, %v852
        %v899 = vxor.u32 %v898, 2147483648
        %v900 = vmul.f32 %v899, 1.442695
        %v901 = vpow.pop %v900
        %v902 = vadd.f32 %v901, 1.0
        %v903 = vrcp.pop %v902
        %v904 = vmul.f32 1.0, %v903
        %v905 = vadd.f32 %v815, %v854
        %v906 = vxor.u32 %v905, 2147483648
        %v907 = vmul.f32 %v906, 1.442695
        %v908 = vpow.pop %v907
        %v909 = vadd.f32 %v908, 1.0
        %v910 = vrcp.pop %v909
        %v911 = vmul.f32 1.0, %v910
        %v912 = vadd.f32 %v893, %v456
        %v913 = vmul.f32 %v904, %v912
        %v914 = vadd.f32 %v816, %v913
        %v915 = vtanh.pop %v914
        %v916 = vsub.f32 1.0, %v911
        %v917 = vmul.f32 %v916, %v915
        %v918 = vmul.f32 %v911, %v807
        %v919 = vadd.f32 %v917, %v918
        %v920 = vpack.c.bf16 %v919, %v919
        %s921 = scalar_lea.vmem %s233, 8 [#allocation7]
        %922 = vst [vmem:[%s921] sm:$0xf] %v920
        %s923 = smul.u32 3, 3
        %s924 = smul.addr %s923, 8
        %s925 = scalar_lea.vmem [#allocation2], %s924
        %v926 = vld [vmem:[%s925] sm:$0xff]
        %v927 = vld [vmem:[%s925 + $0x8] sm:$0xff]
        %v928 = vld [vmem:[%s925 + $0x10] sm:$0xff]
        %929 = vmatprep.subr.bf16.mxu0 %v568
        %930 = vmatpush1.bf16.msra.mxu0 %v567
        %931 = vmatprep.subr.bf16.mxu0 %v565
        %932 = vmatpush1.bf16.msra.mxu0 %v564
        %933 = vmatprep.subr.bf16.mxu0 %v562
        %934 = vmatpush1.bf16.msra.mxu0 %v561
        %935 = vmatprep.subr.bf16.mxu0 %v559
        %936 = vmatpush1.bf16.msra.mxu0 %v558
        %937 = vmatprep.subr.bf16.mxu0 %v556
        %938 = vmatpush1.bf16.msra.mxu0 %v555
        %939 = vmatprep.subr.bf16.mxu0 %v553
        %940 = vmatpush1.bf16.msra.mxu0 %v552
        %941 = vmatprep.subr.bf16.mxu0 %v550
        %942 = vmatpush1.bf16.msra.mxu0 %v549
        %943 = vmatprep.subr.bf16.mxu0 %v547
        %944 = vmatpush1.bf16.msra.mxu0 %v546
        %945 = vmatprep.subr.bf16.mxu0 0
        %946 = vmatpush2.bf16.msra.mxu0 0
        %947 = vmatprep.subr.bf16.mxu0 0
        %948 = vmatpush2.bf16.msra.mxu0 0
        %949 = vmatprep.subr.bf16.mxu0 0
        %950 = vmatpush2.bf16.msra.mxu0 0
        %951 = vmatprep.subr.bf16.mxu0 0
        %952 = vmatpush2.bf16.msra.mxu0 0
        %953 = vmatprep.subr.bf16.mxu0 0
        %954 = vmatpush2.bf16.msra.mxu0 0
        %955 = vmatprep.subr.bf16.mxu0 0
        %956 = vmatpush2.bf16.msra.mxu0 0
        %957 = vmatprep.subr.bf16.mxu0 0
        %958 = vmatpush2.bf16.msra.mxu0 0
        %959 = vmatprep.subr.bf16.mxu0 0
        %960 = vmatpush2.bf16.msra.mxu0 0
        %961 = vmatprep.mubr.bf16.mxu0 0
        %962 = vmatmul.mubr.bf16.gmra.mxu0 %v920
        %v963 = vpop.f32.mrf.mxu0
        %v964 = vadd.f32 0.0, %v963
        %v965 = vpop.f32.mrf.mxu0
        %v966 = vadd.f32 0.0, %v965
        %v967 = vpop.f32.mrf.mxu0
        %v968 = vpop.f32.mrf.mxu0
        %969 = vdwg.mxu0
        %970 = vmatprep.subr.bf16.mxu0 0
        %971 = vmatpush1.bf16.msra.mxu0 %v569
        %972 = vmatprep.subr.bf16.mxu0 0
        %973 = vmatpush1.bf16.msra.mxu0 %v566
        %974 = vmatprep.subr.bf16.mxu0 0
        %975 = vmatpush1.bf16.msra.mxu0 %v563
        %976 = vmatprep.subr.bf16.mxu0 0
        %977 = vmatpush1.bf16.msra.mxu0 %v560
        %978 = vmatprep.subr.bf16.mxu0 0
        %979 = vmatpush1.bf16.msra.mxu0 %v557
        %980 = vmatprep.subr.bf16.mxu0 0
        %981 = vmatpush1.bf16.msra.mxu0 %v554
        %982 = vmatprep.subr.bf16.mxu0 0
        %983 = vmatpush1.bf16.msra.mxu0 %v551
        %984 = vmatprep.subr.bf16.mxu0 0
        %985 = vmatpush1.bf16.msra.mxu0 %v548
        %986 = vmatprep.subr.bf16.mxu0 0
        %987 = vmatpush2.bf16.msra.mxu0 0
        %988 = vmatprep.subr.bf16.mxu0 0
        %989 = vmatpush2.bf16.msra.mxu0 0
        %990 = vmatprep.subr.bf16.mxu0 0
        %991 = vmatpush2.bf16.msra.mxu0 0
        %992 = vmatprep.subr.bf16.mxu0 0
        %993 = vmatpush2.bf16.msra.mxu0 0
        %994 = vmatprep.subr.bf16.mxu0 0
        %995 = vmatpush2.bf16.msra.mxu0 0
        %996 = vmatprep.subr.bf16.mxu0 0
        %997 = vmatpush2.bf16.msra.mxu0 0
        %998 = vmatprep.subr.bf16.mxu0 0
        %999 = vmatpush2.bf16.msra.mxu0 0
        %1000 = vmatprep.subr.bf16.mxu0 0
        %1001 = vmatpush2.bf16.msra.mxu0 0
        %1002 = vmatprep.mubr.bf16.mxu0 0
        %1003 = vmatmul.mubr.bf16.gmra.mxu0 %v920
        %v1004 = vpop.f32.mrf.mxu0
        %v1005 = vadd.f32 0.0, %v1004
        %v1006 = vpop.f32.mrf.mxu0
        %v1007 = vpop.f32.mrf.mxu0
        %v1008 = vpop.f32.mrf.mxu0
        %1009 = vdwg.mxu0
        %v1010 = vadd.f32 %v926, %v964
        %v1011 = vxor.u32 %v1010, 2147483648
        %v1012 = vmul.f32 %v1011, 1.442695
        %v1013 = vpow.pop %v1012
        %v1014 = vadd.f32 %v1013, 1.0
        %v1015 = vrcp.pop %v1014
        %v1016 = vmul.f32 1.0, %v1015
        %v1017 = vadd.f32 %v927, %v966
        %v1018 = vxor.u32 %v1017, 2147483648
        %v1019 = vmul.f32 %v1018, 1.442695
        %v1020 = vpow.pop %v1019
        %v1021 = vadd.f32 %v1020, 1.0
        %v1022 = vrcp.pop %v1021
        %v1023 = vmul.f32 1.0, %v1022
        %v1024 = vadd.f32 %v1005, %v456
        %v1025 = vmul.f32 %v1016, %v1024
        %v1026 = vadd.f32 %v928, %v1025
        %v1027 = vtanh.pop %v1026
        %v1028 = vsub.f32 1.0, %v1023
        %v1029 = vmul.f32 %v1028, %v1027
        %v1030 = vmul.f32 %v1023, %v919
        %v1031 = vadd.f32 %v1029, %v1030
        %v1032 = vpack.c.bf16 %v1031, %v1031
        %s1033 = scalar_lea.vmem %s233, 12 [#allocation7]
        %1034 = vst [vmem:[%s1033] sm:$0xf] %v1032
        %1035 = vst [vmem:[#allocation3] sm:$0xff] %v1031
        %s1036 = sand.u32 %s138, 1
        %s1037 = scalar_lea.sflag [#allocation6], %s1036
        %s1038 = sand.u32 %s138, 1
        %s1039 = smul.addr %s1038, 16
        %s1040 = scalar_lea.vmem [#allocation7], %s1039
        // Predicated region
        $region49: #{tpu_custom_call.1} parent=39 // pred_check
          %p1041 = pneg %p148
        $region50: #{tpu_custom_call.1} parent=39 // pred_check_branch
          %1043 = sbr.rel (%p1041) target = $region52
        $region51: #{tpu_custom_call.1} parent=39 // pred_region
          %s1044 = smul.u32 4, %s20
          %s1046 = ssub.s32 256, 256
          %1047 = vsyncadd %s1037, %s1046
          %s1048 = smul.addr %s1044, 64
          %s1049 = scalar_lea.hbm %s5, %s1048
          %s1050 = sshll.u32 %s1040, 4
          %s1051 = int_to_ptr.vmem [resolvable:$true] %s1050
          %1056 = dma.vmem_to_hbm [thread:$0]  %s1051, 256, %s1049, %s1037, 64, 64, 4
        $region52: #{tpu_custom_call.1} parent=39 // pred_fallthru
          _
      $region40: #{tpu_custom_call.1} parent=5 // pred_fallthru
        _
      %p1057 = scmp.le.s32.totalorder 2, %s15
      // Predicated region
      $region53: #{tpu_custom_call.1} parent=5 // pred_check
        %p1058 = pneg %p1057
      $region54: #{tpu_custom_call.1} parent=5 // pred_check_branch
        %1060 = sbr.rel (%p1058) target = $region56
      $region55: #{tpu_custom_call.1} parent=5 // pred_region
        %s1061 = ssub.s32 %s15, 2
        // Predicated region
        $region57: #{tpu_custom_call.1} parent=55 // pred_check
          %p1062 = pneg %p154
        $region58: #{tpu_custom_call.1} parent=55 // pred_check_branch
          %1064 = sbr.rel (%p1062) target = $region60
        $region59: #{tpu_custom_call.1} parent=55 // pred_region
          %s1065 = sand.u32 %s139, 1
          %s1066 = scalar_lea.sflag [#allocation6], %s1065
          %s1067 = sand.u32 %s139, 1
          %s1068 = smul.addr %s1067, 16
          %s1069 = scalar_lea.vmem [#allocation7], %s1068
          %1070 = dma.done %s1066, 256
        $region60: #{tpu_custom_call.1} parent=55 // pred_fallthru
          _
      $region56: #{tpu_custom_call.1} parent=5 // pred_fallthru
        _
    $region6: #{tpu_custom_call.1} parent=1 // loop_footer
      %s19 = sadd.s32 1, %s15
    $region7: #{tpu_custom_call.1} parent=1 // loop_footer_branch
      %14 = sbr.rel target = $region3
    $region8: #{tpu_custom_call.1} parent=1 // loop_exit
      _
    %1071 = vsyncpa [#allocation5], 1
    %s1072 = scalar_lea.sflag [#allocation5], 1
    %1073 = vsyncpa %s1072, 1
    %1074 = vsyncpa [#allocation6], 1
    %s1075 = scalar_lea.sflag [#allocation6], 1
    %1076 = vsyncpa %s1075, 1

</llo_original>
